<compile_context>
chip_gen: v5e
topology: v5e:2x2
jax: 0.10.0
libtpu: 0.0.40
codegen_flags: <defaults>
</compile_context>

<pallas_src>
import jax
import jax.numpy as jnp
from jax.experimental import pallas as pl
from jax.experimental.pallas import tpu as pltpu


def scale2d_kernel(s_ref, x_ref, o_ref):
    """s_ref: (Rt, 1) per-row scale; x_ref/o_ref: (Rt, T) tile of (B*C, H*W)."""
    o_ref[...] = (x_ref[...] * s_ref[...]).astype(o_ref.dtype)


def _pick_tile(dim, unit, max_tile):
    """Tile size for one axis.

    Returns the full dim when dim <= unit (full-dim blocks are always legal).
    Otherwise returns a multiple of `unit`, capped by `max_tile`, preferring a
    tile that divides `dim` exactly when that divisor is not much smaller than
    the cap; if no good divisor exists, the non-dividing cap is used and the
    ragged last block is masked by Pallas (cdiv grid).
    """
    if dim <= unit:
        return dim
    cap = min(dim, max_tile)
    cap = max(unit, (cap // unit) * unit)
    if dim % unit == 0:
        t = cap
        while t > unit and dim % t != 0:
            t -= unit
        if dim % t == 0 and t * 2 >= cap:
            return t
    return cap


def scale2d_forward(x, scale, *, force_pallas=False, min_pallas_bytes=1 << 20):
    """x: (B, C, H, W); scale: (1, C, 1, 1).  Returns x * scale."""
    B, C, H, W = x.shape
    HW = H * W
    BC = B * C

    out_dtype = jnp.result_type(x.dtype, scale.dtype)
    in_bytes = jnp.dtype(x.dtype).itemsize
    out_bytes = jnp.dtype(out_dtype).itemsize
    tile_bytes = max(in_bytes, out_bytes)

    # Small-tensor fast path: launch + pipeline prologue would dominate.
    if not force_pallas and x.size * in_bytes < min_pallas_bytes:
        return (x * scale).astype(out_dtype)

    # Fold batch+channel into rows (sublanes), spatial into lanes.
    x2 = x.reshape(BC, HW)
    scale_rows = jnp.broadcast_to(scale.reshape(1, C), (B, C)).reshape(BC, 1)

    # dtype-aware sublane unit: 8 (f32), 16 (bf16/f16), 32 (int8/fp8).
    sublane_unit = max(8, 32 // in_bytes)

    # ~4 MiB per block => 2 bufs x (in + out) ~= 16 MiB < 32 MiB scoped VMEM.
    block_bytes = 4 * 1024 * 1024

    # Lanes first (lane-dense wide blocks are the biggest lever), assuming the
    # minimum sublane-unit rows; then derive rows from the remaining budget.
    lane_budget = max(128, (block_bytes // (sublane_unit * tile_bytes)) // 128 * 128)
    t_lanes = _pick_tile(HW, 128, lane_budget)
    row_budget = max(sublane_unit, block_bytes // (t_lanes * tile_bytes))
    t_rows = _pick_tile(BC, sublane_unit, row_budget)

    n_row_blocks = pl.cdiv(BC, t_rows)
    n_lane_blocks = pl.cdiv(HW, t_lanes)

    if n_row_blocks >= n_lane_blocks:
        # Rows outermost; scale block index constant along the inner lane axis
        # (its re-fetch is skipped by the pipeline).
        grid = (n_row_blocks, n_lane_blocks)
        scale_map = lambda i, j: (i, 0)
        x_map = lambda i, j: (i, j)
    else:
        # Lane-block axis outermost so the megacore split (v7x) shards the
        # axis that actually has multiple blocks.  Scale re-fetch along the
        # inner row axis is a (t_rows, 1) DMA - negligible.
        grid = (n_lane_blocks, n_row_blocks)
        scale_map = lambda j, i: (i, 0)
        x_map = lambda j, i: (i, j)

    out2 = pl.pallas_call(
        scale2d_kernel,
        out_shape=jax.ShapeDtypeStruct((BC, HW), out_dtype),
        grid_spec=pltpu.PrefetchScalarGridSpec(
            num_scalar_prefetch=0,
            grid=grid,
            in_specs=[
                pl.BlockSpec((t_rows, 1), scale_map),        # per-row scale
                pl.BlockSpec((t_rows, t_lanes), x_map),      # x tile
            ],
            out_specs=pl.BlockSpec((t_rows, t_lanes), x_map),
        ),
        compiler_params=pltpu.CompilerParams(
            dimension_semantics=("parallel", "parallel"),
            vmem_limit_bytes=32 * 1024 * 1024,
        ),
    )(scale_rows, x2)

    return out2.reshape(B, C, H, W)


if __name__ == "__main__":
    # Shapes consistent with the module: batch=2, channels=4, 16x16 spatial.
    B, C, H, W = 2, 4, 16, 16
    initial = 1.0

    key = jax.random.PRNGKey(0)
    k_x, k_s, k_x2, k_s2 = jax.random.split(key, 4)

    x = jax.random.normal(k_x, (B, C, H, W), dtype=jnp.float32)
    # Parameter init matches the PyTorch module (filled with `initial`);
    # perturbed so the test is non-trivial.
    scale = (jnp.full((1, C, 1, 1), initial, dtype=jnp.float32)
             + 0.1 * jax.random.normal(k_s, (1, C, 1, 1), dtype=jnp.float32))

    ref = x * scale

    # 1) Force the Pallas path at the module's small test shape.
    out = jax.block_until_ready(scale2d_forward(x, scale, force_pallas=True))
    assert out.shape == ref.shape and out.dtype == ref.dtype
    assert jnp.allclose(out, ref, atol=1e-6, rtol=1e-6), "pallas path mismatch"

    # 2) Default call on a tiny tensor exercises the XLA fast path.
    out_fast = jax.block_until_ready(scale2d_forward(x, scale))
    assert jnp.allclose(out_fast, ref, atol=1e-6, rtol=1e-6), "fast path mismatch"

    # 3) Ragged shape (B*C not a multiple of 8, H*W not a multiple of 128)
    #    through Pallas to exercise the masked-edge tiling path.
    B2, C2, H2, W2 = 3, 5, 24, 20
    x2 = jax.random.normal(k_x2, (B2, C2, H2, W2), dtype=jnp.float32)
    scale2 = (jnp.full((1, C2, 1, 1), initial, dtype=jnp.float32)
              + 0.1 * jax.random.normal(k_s2, (1, C2, 1, 1), dtype=jnp.float32))
    out2 = jax.block_until_ready(scale2d_forward(x2, scale2, force_pallas=True))
    ref2 = x2 * scale2
    assert jnp.allclose(out2, ref2, atol=1e-6, rtol=1e-6), "ragged path mismatch"

    print("KERNEL_OK")
</pallas_src>

<mosaic_0001>
module attributes {stable_mosaic.version = 11 : i64} {
  func.func @scale2d_kernel(%arg0: i32, %arg1: i32, %arg2: memref<8x1xf32, #tpu.memory_space<vmem>>, %arg3: memref<8x256xf32, #tpu.memory_space<vmem>>, %arg4: memref<8x256xf32, #tpu.memory_space<vmem>>) attributes {dimension_semantics = [#tpu.dimension_semantics<parallel>, #tpu.dimension_semantics<parallel>], iteration_bounds = array<i64: 1, 1>, scalar_prefetch = 0 : i64, scratch_operands = 0 : i64, tpu.core_type = #tpu.core_type<tc>, window_params = [{transform_indices = @transform_0, window_bounds = array<i64: 8, 1>}, {transform_indices = @transform_1, window_bounds = array<i64: 8, 256>}, {transform_indices = @transform_2, window_bounds = array<i64: 8, 256>}]} {
    %c0 = arith.constant 0 : index
    %c0_0 = arith.constant 0 : index
    %0 = vector.load %arg3[%c0, %c0_0] : memref<8x256xf32, #tpu.memory_space<vmem>>, vector<8x256xf32>
    %c0_1 = arith.constant 0 : index
    %c0_2 = arith.constant 0 : index
    %1 = vector.load %arg2[%c0_1, %c0_2] : memref<8x1xf32, #tpu.memory_space<vmem>>, vector<8x1xf32>
    %2 = vector.broadcast %1 : vector<8x1xf32> to vector<8x256xf32>
    %3 = arith.mulf %0, %2 : vector<8x256xf32>
    %c0_3 = arith.constant 0 : index
    %c0_4 = arith.constant 0 : index
    %4 = vector.load %arg4[%c0_3, %c0_4] : memref<8x256xf32, #tpu.memory_space<vmem>>, vector<8x256xf32>
    tpu.vector_store %arg4[%c0_3, %c0_4], %3 {strides = array<i32>} : memref<8x256xf32, #tpu.memory_space<vmem>>, vector<8x256xf32>,
    return
  }
  func.func @transform_0(%arg0: i32, %arg1: i32) -> (i32, i32) {
    %c0_i32 = arith.constant 0 : i32
    %c0_i32_0 = arith.constant 0 : i32
    return %arg0, %c0_i32 : i32, i32
  }
  func.func @transform_1(%arg0: i32, %arg1: i32) -> (i32, i32) {
    %c0_i32 = arith.constant 0 : i32
    return %arg0, %arg1 : i32, i32
  }
  func.func @transform_2(%arg0: i32, %arg1: i32) -> (i32, i32) {
    %c0_i32 = arith.constant 0 : i32
    return %arg0, %arg1 : i32, i32
  }
}

</mosaic_0001>

<llo_original>
// kernel: tpu_custom_call.1
$region0: #{tpu_custom_call.1}
  #allocation0 [shape = 'u32[]', space=smem, size = 0x4, offset = 0x4, fixed_abs, tag = 'smem constant byte address 0x4 - core index']
  #allocation1 [shape = 'u32[72,128]{1,0:T(1,128)}', space=vmem, size = 0x9000, scoped, tag = 'internal scratch']
  %s0 = inlined_call_operand.vmem [shape: f32[8,1], index: 0, kind: input, shape index: {}]
  %s1 = inlined_call_operand.hbm [shape: f32[8,256], index: 1, kind: input, shape index: {}]
  %s2 = inlined_call_operand.hbm [shape: f32[8,256], index: 2, kind: output, shape index: {}]
  %s3 = sld [smem:[#allocation0]]
  $region22: #{tpu_custom_call.1} parent=0
    _
  %s5 = ssub.s32 1, %s3
  %s6 = scalar_select 0, %s5, %s3
  $region1: #{tpu_custom_call.1} parent=0
    #allocation2 [shape = 'u8[8192]{0}', space=vmem, size = 0x2000, scoped, tag = 'input window, operand 1, single buffered']
    #allocation3 [shape = 's32[1]{0}', space=sflag, size = 0x4, scoped, tag = 'scoped memory for tpu_custom_call.1']
    #allocation4 [shape = 's32[1]{0}', space=sflag, size = 0x4, scoped, tag = 'scoped memory for tpu_custom_call.1']
    #allocation5 [shape = 'u8[8192]{0}', space=vmem, size = 0x2000, scoped, tag = 'output window, operand 0, single buffered']
    %7 = vsyncpa [#allocation3], 0
    %8 = vsyncpa [#allocation4], 0
    // Predicated region
    $region2: #{tpu_custom_call.1} parent=1 // pred_check
      _
    $region3: #{tpu_custom_call.1} parent=1 // pred_check_branch
      %10 = sbr.rel (0) target = $region5
    $region4: #{tpu_custom_call.1} parent=1 // pred_region
      _
    $region5: #{tpu_custom_call.1} parent=1 // pred_fallthru
      _
    // Predicated region
    $region6: #{tpu_custom_call.1} parent=1 // pred_check
      _
    $region7: #{tpu_custom_call.1} parent=1 // pred_check_branch
      %12 = sbr.rel (0) target = $region9
    $region8: #{tpu_custom_call.1} parent=1 // pred_region
      %14 = vsyncadd [#allocation3], 0
      %s16 = sshll.u32 %s1, 4
      %s17 = int_to_ptr.hbm [resolvable:$true] %s16
      %s18 = sshll.u32 [#allocation2], 4
      %s19 = int_to_ptr.vmem [resolvable:$true] %s18
      %21 = dma.hbm_to_vmem [thread:$0]  %s17, 256, %s19, [#allocation3]
    $region9: #{tpu_custom_call.1} parent=1 // pred_fallthru
      _
    // Predicated region
    $region10: #{tpu_custom_call.1} parent=1 // pred_check
      _
    $region11: #{tpu_custom_call.1} parent=1 // pred_check_branch
      %23 = sbr.rel (0) target = $region13
    $region12: #{tpu_custom_call.1} parent=1 // pred_region
      %25 = dma.done [#allocation3], 256
    $region13: #{tpu_custom_call.1} parent=1 // pred_fallthru
      _
    %v26 = vld [vmem:[#allocation2] sm:$0xff]
    %v27 = vld [vmem:[#allocation2 + $0x8] sm:$0xff]
    %v28 = vld [vmem:[%s0] sm:$0xff]
    %30 = vset.pattern.permute.xlu0 0
    %31 = vperm.xlu0 %30, %v28
    %v32 = vpop.permute.xlu0 %31
    %v34 = vmul.f32 %v26, %v32
    %v35 = vmul.f32 %v27, %v32
    %36 = vst [vmem:[#allocation5] sm:$0xff] %v34
    %37 = vst [vmem:[#allocation5 + $0x8] sm:$0xff] %v35
    // Predicated region
    $region14: #{tpu_custom_call.1} parent=1 // pred_check
      _
    $region15: #{tpu_custom_call.1} parent=1 // pred_check_branch
      %39 = sbr.rel (0) target = $region17
    $region16: #{tpu_custom_call.1} parent=1 // pred_region
      %41 = vsyncadd [#allocation4], 0
      %s43 = sshll.u32 [#allocation5], 4
      %s44 = int_to_ptr.vmem [resolvable:$true] %s43
      %s45 = sshll.u32 %s2, 4
      %s46 = int_to_ptr.hbm [resolvable:$true] %s45
      %48 = dma.vmem_to_hbm [thread:$0]  %s44, 256, %s46, [#allocation4]
    $region17: #{tpu_custom_call.1} parent=1 // pred_fallthru
      _
    // Predicated region
    $region18: #{tpu_custom_call.1} parent=1 // pred_check
      _
    $region19: #{tpu_custom_call.1} parent=1 // pred_check_branch
      %50 = sbr.rel (0) target = $region21
    $region20: #{tpu_custom_call.1} parent=1 // pred_region
      %52 = dma.done [#allocation4], 256
    $region21: #{tpu_custom_call.1} parent=1 // pred_fallthru
      _
    %53 = vsyncpa [#allocation3], 1
    %54 = vsyncpa [#allocation4], 1

</llo_original>
